<compile_context>
chip_gen: v5e
topology: v5e:2x2
jax: 0.10.0
libtpu: 0.0.40
codegen_flags: <defaults>
</compile_context>

<pallas_src>
import functools
import math

import jax
import jax.numpy as jnp
from jax.experimental import pallas as pl
from jax.experimental.pallas import tpu as pltpu

_LANE = 128
_MAX_LANE_TILE = 2048


def _copy_kernel(x_ref, o_ref):
    # identity copy of the current lane-dense block
    o_ref[...] = x_ref[...]


def _sublane(itemsize):
    # sublane-full row multiple: 8 for f32, 16 for bf16, 32 for int8/fp8
    return max(8, 32 // itemsize)


def _round_up(x, m):
    return ((x + m - 1) // m) * m


def _cdiv(a, b):
    return (a + b - 1) // b


def _tpu_tuning():
    """Generation-aware (per-buffer tile byte cap, vmem_limit_bytes-or-None)."""
    try:
        kind = jax.devices()[0].device_kind.lower()
    except Exception:  # pragma: no cover - non-TPU / query failure
        kind = ""
    if "v7" in kind:
        # 8 MiB blocks amortize the ~0.35us/step overhead at 3.2 TB/s HBM.
        # 4 live double-buffered buffers = 32 MiB -> raise scoped VMEM to 40 MiB
        # (64 MiB physical per TC).
        return 8 << 20, 40 << 20
    if "v6" in kind:
        # 4 MiB blocks: 16 MiB live, inside the 32 MiB scoped default.
        return 4 << 20, None
    # v5e / older / unknown: stay well inside the 16 MiB scoped default.
    return 2 << 20, None


def _choose_layout(total, itemsize, tile_cap):
    """Pick (rows, lane, tile_r) for a lane-dense (rows, lane) relayout, or None."""
    if total % _LANE != 0:
        return None
    sub = _sublane(itemsize)
    # lane width: grow while the flat size stays divisible and rows stay >= sub
    lane = _LANE
    while (lane * 2 <= _MAX_LANE_TILE
           and total % (lane * 2) == 0
           and total // (lane * 2) >= sub):
        lane *= 2
    rows = total // lane
    rows_pad = _round_up(rows, sub)
    # rows per block: sublane multiple, bounded by the byte cap, never bigger
    # than needed to cover all rows
    tile_r = sub
    while (tile_r * 2 * lane * itemsize <= tile_cap
           and tile_r * 2 <= rows_pad):
        tile_r *= 2
    # guarantee >=2 grid blocks when possible so both v7x TensorCores get work
    while _cdiv(rows, tile_r) < 2 and tile_r > sub:
        tile_r //= 2
    return rows, lane, tile_r


@functools.partial(jax.jit, static_argnames=("materialize",))
def flatten_pallas(x, materialize=True):
    """Equivalent of Flatten.forward: x.view(-1, prod(x.shape[1:])).

    materialize=False returns the metadata-only reshape (free under jit);
    materialize=True (default) runs a single well-tiled Pallas identity copy
    so there is an actual kernel boundary.
    """
    n = x.shape[0] if x.ndim > 0 else 1
    f = math.prod(x.shape[1:]) if x.ndim > 1 else 1
    out = x.reshape(n, f)  # metadata-only under jit
    if not materialize:
        return out

    itemsize = jnp.dtype(x.dtype).itemsize
    total = n * f
    if total == 0:
        return out  # empty input: nothing to copy, avoid a 0-block grid

    tile_cap, vmem_limit = _tpu_tuning()
    cost = pl.CostEstimate(flops=0, transcendentals=0,
                           bytes_accessed=2 * total * itemsize)

    layout = _choose_layout(total, itemsize, tile_cap)
    if layout is not None:
        rows, lane, tile_r = layout
        x_rl = out.reshape(rows, lane)  # metadata-only relayout
        out_rl = pl.pallas_call(
            _copy_kernel,
            out_shape=jax.ShapeDtypeStruct((rows, lane), x.dtype),
            grid_spec=pltpu.PrefetchScalarGridSpec(
                num_scalar_prefetch=0,
                grid=(_cdiv(rows, tile_r),),
                in_specs=[pl.BlockSpec((tile_r, lane), lambda i: (i, 0))],
                out_specs=pl.BlockSpec((tile_r, lane), lambda i: (i, 0)),
            ),
            compiler_params=pltpu.CompilerParams(
                dimension_semantics=("parallel",),
                vmem_limit_bytes=vmem_limit),
            cost_estimate=cost,
        )(x_rl)
        return out_rl.reshape(n, f)  # metadata-only

    # Fallback (total not a multiple of 128): keep the natural (n, f) layout but
    # tile BOTH axes with cdiv grids so no block can ever exceed the VMEM budget
    # (edge blocks are partial and lower to masked stores only at the ragged tail).
    # TODO(synk): route the 128-aligned prefix through the lane-dense path and
    # handle the <=127-element tail separately to avoid masked stores entirely.
    sub = _sublane(itemsize)
    tile_f = min(_round_up(f, _LANE), _MAX_LANE_TILE)
    tile_n = sub
    while (tile_n * 2 * tile_f * itemsize <= tile_cap
           and tile_n * 2 <= _round_up(n, sub)):
        tile_n *= 2
    while _cdiv(n, tile_n) * _cdiv(f, tile_f) < 2 and tile_n > sub:
        tile_n //= 2
    return pl.pallas_call(
        _copy_kernel,
        out_shape=jax.ShapeDtypeStruct((n, f), x.dtype),
        grid_spec=pltpu.PrefetchScalarGridSpec(
            num_scalar_prefetch=0,
            grid=(_cdiv(n, tile_n), _cdiv(f, tile_f)),
            in_specs=[pl.BlockSpec((tile_n, tile_f), lambda i, j: (i, j))],
            out_specs=pl.BlockSpec((tile_n, tile_f), lambda i, j: (i, j)),
        ),
        compiler_params=pltpu.CompilerParams(
            dimension_semantics=("parallel", "parallel"),
            vmem_limit_bytes=vmem_limit),
        cost_estimate=cost,
    )(out)


if __name__ == "__main__":
    key = jax.random.PRNGKey(0)

    # primary test: NCHW input consistent with the module (batch=2, C=4, 16x16)
    x = jax.random.normal(key, (2, 4, 16, 16), dtype=jnp.float32)
    ref = x.reshape(x.shape[0], -1)
    y = jax.block_until_ready(flatten_pallas(x))
    assert y.shape == (2, 4 * 16 * 16), y.shape
    assert y.dtype == x.dtype
    assert bool(jnp.array_equal(y, ref))

    # metadata-only path (no materialization copy)
    y_meta = jax.block_until_ready(flatten_pallas(x, materialize=False))
    assert y_meta.shape == ref.shape
    assert bool(jnp.array_equal(y_meta, ref))

    # ragged fallback: feature size not a multiple of 128
    x2 = jax.random.normal(jax.random.PRNGKey(1), (2, 3, 5, 7), dtype=jnp.float32)
    y2 = jax.block_until_ready(flatten_pallas(x2))
    assert y2.shape == (2, 3 * 5 * 7), y2.shape
    assert bool(jnp.array_equal(y2, x2.reshape(2, -1)))

    # slightly larger lane-dense case exercising a >=2-block ("parallel") grid
    x3 = jax.random.normal(jax.random.PRNGKey(2), (8, 4, 32, 32), dtype=jnp.float32)
    y3 = jax.block_until_ready(flatten_pallas(x3))
    assert y3.shape == (8, 4 * 32 * 32), y3.shape
    assert bool(jnp.array_equal(y3, x3.reshape(8, -1)))

    print("KERNEL_OK")
</pallas_src>

<mosaic_0001>
module attributes {stable_mosaic.version = 11 : i64} {
  func.func @_copy_kernel(%arg0: i32, %arg1: memref<8x256xf32, #tpu.memory_space<vmem>>, %arg2: memref<8x256xf32, #tpu.memory_space<vmem>>) attributes {dimension_semantics = [#tpu.dimension_semantics<parallel>], iteration_bounds = array<i64: 1>, scalar_prefetch = 0 : i64, scratch_operands = 0 : i64, tpu.core_type = #tpu.core_type<tc>, window_params = [{transform_indices = @transform_0, window_bounds = array<i64: 8, 256>}, {transform_indices = @transform_1, window_bounds = array<i64: 8, 256>}]} {
    %c0 = arith.constant 0 : index
    %c0_0 = arith.constant 0 : index
    %0 = vector.load %arg1[%c0, %c0_0] : memref<8x256xf32, #tpu.memory_space<vmem>>, vector<8x256xf32>
    %c0_1 = arith.constant 0 : index
    %c0_2 = arith.constant 0 : index
    %1 = vector.load %arg2[%c0_1, %c0_2] : memref<8x256xf32, #tpu.memory_space<vmem>>, vector<8x256xf32>
    tpu.vector_store %arg2[%c0_1, %c0_2], %0 {strides = array<i32>} : memref<8x256xf32, #tpu.memory_space<vmem>>, vector<8x256xf32>,
    return
  }
  func.func @transform_0(%arg0: i32) -> (i32, i32) {
    %c0_i32 = arith.constant 0 : i32
    %c0_i32_0 = arith.constant 0 : i32
    return %arg0, %c0_i32 : i32, i32
  }
  func.func @transform_1(%arg0: i32) -> (i32, i32) {
    %c0_i32 = arith.constant 0 : i32
    %c0_i32_0 = arith.constant 0 : i32
    return %arg0, %c0_i32 : i32, i32
  }
}

</mosaic_0001>

<llo_original>
// kernel: flatten_pallas.1
$region0: #{flatten_pallas.1}
  #allocation0 [shape = 'u32[]', space=smem, size = 0x4, offset = 0x4, fixed_abs, tag = 'smem constant byte address 0x4 - core index']
  #allocation1 [shape = 'u32[72,128]{1,0:T(1,128)}', space=vmem, size = 0x9000, scoped, tag = 'internal scratch']
  %s0 = inlined_call_operand.vmem [shape: f32[8,256], index: 0, kind: input, shape index: {}]
  %s1 = inlined_call_operand.vmem [shape: f32[8,256], index: 1, kind: output, shape index: {}]
  %s2 = sld [smem:[#allocation0]]
  $region14: #{flatten_pallas.1} parent=0
    _
  %s4 = ssub.s32 1, %s2
  %s5 = scalar_select 0, %s4, %s2
  // Predicated region
  $region2: #{flatten_pallas.1} parent=0 // pred_check
    _
  $region3: #{flatten_pallas.1} parent=0 // pred_check_branch
    %7 = sbr.rel (0) target = $region5
  $region4: #{flatten_pallas.1} parent=0 // pred_region
    _
  $region5: #{flatten_pallas.1} parent=0 // pred_fallthru
    _
  %v8 = vld [vmem:[%s0] sm:$0xff]
  %v9 = vld [vmem:[%s0 + $0x8] sm:$0xff]
  %10 = vst [vmem:[%s1] sm:$0xff] %v8
  %11 = vst [vmem:[%s1 + $0x8] sm:$0xff] %v9
  // Predicated region
  $region6: #{flatten_pallas.1} parent=0 // pred_check
    _
  $region7: #{flatten_pallas.1} parent=0 // pred_check_branch
    %13 = sbr.rel (0) target = $region9
  $region8: #{flatten_pallas.1} parent=0 // pred_region
    _
  $region9: #{flatten_pallas.1} parent=0 // pred_fallthru
    _
  // Predicated region
  $region10: #{flatten_pallas.1} parent=0 // pred_check
    _
  $region11: #{flatten_pallas.1} parent=0 // pred_check_branch
    %15 = sbr.rel (0) target = $region13
  $region12: #{flatten_pallas.1} parent=0 // pred_region
    _
  $region13: #{flatten_pallas.1} parent=0 // pred_fallthru
    _

</llo_original>
